<compile_context>
chip_gen: v5e
topology: v5e:2x2
jax: 0.10.0
libtpu: 0.0.40
codegen_flags: <defaults>
</compile_context>

<pallas_src>
import functools

import numpy as np
import jax
import jax.numpy as jnp
from jax import lax
from jax.experimental import pallas as pl
from jax.experimental.pallas import tpu as pltpu


_NT_DIMS = (((1,), (1,)), ((), ()))   # contract the point axis of both operands
_PAD_COORD = 1.0e6                    # far-away coordinate for padded rows


# ----------------------------------------------------------------------------
# Pallas kernel: flat-kernel mean shift, one seed tile per grid step.
#
#   seed_ref [S, 4]  f32 : seed xyz (col 3 carries a 1.0, unused)   -- block i
#   ptsT_ref [4, NP] f32 : points^T rows (x, y, z, 1)               -- resident
#   out_ref  [S, 4]  f32 : cols 0:3 converged center, col 3 = intensity
# ----------------------------------------------------------------------------
def _meanshift_kernel(seed_ref, ptsT_ref, out_ref, *, tile_p, n_chunks,
                      n_valid, max_iters, bw2, tol2):
    tile_s = seed_ref.shape[0]

    col = lax.broadcasted_iota(jnp.int32, (tile_s, 4), 1)
    is_count_col = col == 3
    rows = lax.broadcasted_iota(jnp.int32, (tile_s, 1), 0)
    row_valid = ((pl.program_id(0) * tile_s + rows) < n_valid).astype(jnp.float32)

    def one_iter(seeds):
        sx = seeds[:, 0:1]
        sy = seeds[:, 1:2]
        sz = seeds[:, 2:3]

        def chunk(c, acc):
            start = pl.multiple_of(c * tile_p, tile_p)
            p4 = ptsT_ref[:, pl.ds(start, tile_p)]            # [4, P] f32
            # radius test fully in f32 on the VPU (no bf16 cancellation)
            dx = sx - p4[0:1, :]
            dy = sy - p4[1:2, :]
            dz = sz - p4[2:3, :]
            d2 = dx * dx + dy * dy + dz * dz                  # [S, P] f32
            within = (d2 <= bw2).astype(jnp.float32)          # compare+convert
            # MXU: within [S,P] x points^T [4,P] -> [S,4]
            # (xyz sums in cols 0:2, counts in col 3 via the ones row)
            return acc + lax.dot_general(
                within, p4, _NT_DIMS, preferred_element_type=jnp.float32)

        sums = lax.fori_loop(0, n_chunks, chunk,
                             jnp.zeros((tile_s, 4), jnp.float32))
        counts = sums[:, 3:4]                                  # [S, 1]
        new = jnp.where(counts > 0.0,
                        sums / jnp.maximum(counts, 1.0),       # exact divide
                        seeds)
        return new, counts

    def cond(carry):
        it, _, _, shift2 = carry
        return jnp.logical_and(it < max_iters, shift2 > tol2)

    def body(carry):
        it, seeds, _, _ = carry
        new, counts = one_iter(seeds)
        # padded rows (and the count column) do not gate convergence
        diff = jnp.where(is_count_col, 0.0, new - seeds) * row_valid
        shift2 = jnp.max(jnp.sum(diff * diff, axis=-1, keepdims=True))
        return it + 1, new, counts, shift2

    init = (jnp.int32(0), seed_ref[...],
            jnp.zeros((tile_s, 1), jnp.float32),
            jnp.array(jnp.inf, jnp.float32))
    _, seeds_f, counts_f, _ = lax.while_loop(cond, body, init)
    # col 3 of the output carries the cluster intensity (#points within bw)
    out_ref[...] = jnp.where(is_count_col, counts_f, seeds_f)


def _round_up(x, m):
    return ((x + m - 1) // m) * m


def _vmem_capacity_bytes():
    try:
        return int(pltpu.get_tpu_info().vmem_capacity_bytes)
    except Exception:
        return 64 * 2 ** 20        # conservative default (v7x per-TC VMEM)


def meanshift_converge(points, bandwidth, *, max_iters=300, tile_s=64,
                       tile_p=2048):
    """Flat-kernel mean shift over already-compacted points (each its own seed).

    Returns [N, 4] f32: cols 0:3 = converged center per seed,
    col 3 = number of points within `bandwidth` of the pre-update center
    (sklearn's intensity).  `tile_p` is sweepable (smaller may help on v5e).
    """
    pts = jnp.asarray(points, jnp.float32)
    n = int(pts.shape[0])

    if n <= tile_p:
        npad = max(_round_up(n, 128), 128)
        tile_p = npad
    else:
        npad = _round_up(n, tile_p)
    tile_s = min(tile_s, npad)
    n_chunks = npad // tile_p
    grid = (npad // tile_s,)

    pts_p = jnp.pad(pts, ((0, npad - n), (0, 0)), constant_values=_PAD_COORD)
    ones = jnp.ones((npad, 1), jnp.float32)
    seeds4 = jnp.concatenate([pts_p, ones], axis=-1)           # [NP, 4] f32
    ptsT4 = jnp.concatenate([pts_p.T, ones.T], axis=0)         # [4, NP] f32

    # Rough VMEM budget: resident points^T (double-buffered, sublane-padded),
    # the small seed/out blocks (lane-padded 4->128) and the [S,P] temporaries.
    # (ptsT4's index map is constant, so single-buffering it would save half of
    #  its footprint, but after compaction that is only ~3 MB at 100K points.)
    bytes_ptsT = 2 * 8 * npad * 4
    bytes_blocks = 2 * 2 * tile_s * 128 * 4
    bytes_tmp = 8 * tile_s * tile_p * 4
    vmem_est = bytes_ptsT + bytes_blocks + bytes_tmp
    cap = _vmem_capacity_bytes()
    vmem_limit = int(min(max(32 * 2 ** 20, 2 * vmem_est), (cap * 3) // 4))

    kernel = functools.partial(
        _meanshift_kernel, tile_p=tile_p, n_chunks=n_chunks, n_valid=n,
        max_iters=int(max_iters), bw2=float(bandwidth) ** 2,
        tol2=float(1e-3 * bandwidth) ** 2)

    out = pl.pallas_call(
        kernel,
        out_shape=jax.ShapeDtypeStruct((npad, 4), jnp.float32),
        grid=grid,
        in_specs=[
            pl.BlockSpec((tile_s, 4), lambda i: (i, 0)),   # seeds, per tile
            pl.BlockSpec((4, npad), lambda i: (0, 0)),     # points^T, resident
        ],
        out_specs=pl.BlockSpec((tile_s, 4), lambda i: (i, 0)),
        compiler_params=pltpu.CompilerParams(
            dimension_semantics=("parallel",),
            vmem_limit_bytes=vmem_limit),
    )(seeds4, ptsT4)
    return out[:n]


# ----------------------------------------------------------------------------
# Module wrapper mirroring the PyTorch `Clustering` class (MEANSHIFT alg).
# ----------------------------------------------------------------------------
class ClusteringPallas:
    def __init__(self, bandwidth, min_cluster_size):
        self.bandwidth = float(bandwidth)
        self.min_cluster_size = int(min_cluster_size)   # only used by HDBSCAN
        self.things_ids = []

    def set_ids(self, ids):
        self.things_ids = list(ids)

    def forward(self, sem_preds, offsets, coors):
        sem_np = np.asarray(sem_preds).reshape(-1)
        off_np = np.asarray(offsets, np.float32).reshape(-1, 3)
        coor_np = np.asarray(coors, np.float32).reshape(-1, 3)
        n = sem_np.shape[0]

        valid = np.isin(sem_np, np.asarray(self.things_ids)).reshape(-1)
        clustered_ids = np.zeros(n, dtype=np.int32)
        vidx = np.where(valid)[0]
        if vidx.size == 0:
            return clustered_ids

        # Compact to "thing" points on the host: the kernel is O(N^2) per
        # iteration, so dropping stuff points up-front is the biggest lever.
        shifted = coor_np + off_np
        vpts = shifted[vidx]
        centroid = vpts.mean(axis=0, dtype=np.float64).astype(np.float32)
        vpts_c = vpts - centroid          # well-conditioned f32 distances

        # --- hot path: Pallas mean shift on TPU ---
        out = np.asarray(jax.block_until_ready(
            meanshift_converge(vpts_c, self.bandwidth)))
        centers = out[:, :3]
        inten = out[:, 3].astype(np.float64)

        # --- host glue: sklearn-style dedup + nearest-center labels ---
        # TODO(synk): sklearn's bin_seeding and the HDBSCAN branch have no clean
        # Pallas equivalent; all valid points are used as seeds instead.
        bw2 = self.bandwidth ** 2
        nv = vidx.size
        remaining = np.ones(nv, dtype=bool)
        kept = []
        while remaining.any():                     # one iteration per kept center
            i = int(np.argmax(np.where(remaining, inten, -np.inf)))
            kept.append(i)
            d2 = ((centers - centers[i]) ** 2).sum(-1)
            remaining &= d2 > bw2
        uniq = centers[np.asarray(kept)]

        labels = np.empty(nv, dtype=np.int32)
        chunk = 1 << 16
        for s in range(0, nv, chunk):              # bounded [chunk, K] matrices
            e = min(s + chunk, nv)
            d2 = ((vpts_c[s:e, None, :] - uniq[None, :, :]) ** 2).sum(-1)
            labels[s:e] = d2.argmin(-1).astype(np.int32) + 1   # ms.labels_ + 1
        clustered_ids[vidx] = labels

        # forward(): shift nonzero ids by last_id + 1 (last_id == 0)
        thing_ind = np.where(clustered_ids != 0)
        clustered_ids[thing_ind] += 0 + 1
        return clustered_ids


# ----------------------------------------------------------------------------
if __name__ == "__main__":
    key = jax.random.PRNGKey(0)
    N = 128
    k1, k2, k3, k4 = jax.random.split(key, 4)

    sem_preds = jax.random.randint(k1, (N,), 0, 5, dtype=jnp.int32)
    # coors clustered around a few blobs so mean shift has structure
    blob_centers = jnp.array(
        [[0.0, 0.0, 0.0], [6.0, 0.0, 0.0], [0.0, 6.0, 0.0], [6.0, 6.0, 0.0]],
        jnp.float32)
    blob_assign = jax.random.randint(k2, (N,), 0, 4)
    coors = blob_centers[blob_assign] + 0.4 * jax.random.normal(
        k3, (N, 3), dtype=jnp.float32)
    offsets = 0.1 * jax.random.normal(k4, (N, 3), dtype=jnp.float32)

    module = ClusteringPallas(bandwidth=1.5, min_cluster_size=10)
    module.set_ids([1, 2, 3])    # "thing" semantic classes

    ids = module.forward(sem_preds, offsets, coors)

    assert ids.shape == (N,) and ids.dtype == np.int32
    valid_np = np.isin(np.asarray(sem_preds), [1, 2, 3])
    assert np.all(ids[~valid_np] == 0)        # stuff points stay 0
    assert np.all(ids[valid_np] >= 2)         # thing points get shifted ids
    print("KERNEL_OK")
</pallas_src>

<mosaic_0001>
module attributes {stable_mosaic.version = 11 : i64} {
  func.func @_meanshift_kernel(%arg0: i32, %arg1: memref<64x4xf32, #tpu.memory_space<vmem>>, %arg2: memref<4x128xf32, #tpu.memory_space<vmem>>, %arg3: memref<64x4xf32, #tpu.memory_space<vmem>>) attributes {dimension_semantics = [#tpu.dimension_semantics<parallel>], iteration_bounds = array<i64: 2>, scalar_prefetch = 0 : i64, scratch_operands = 0 : i64, tpu.core_type = #tpu.core_type<tc>, window_params = [{transform_indices = @transform_0, window_bounds = array<i64: 64, 4>}, {pipeline_mode = #tpu.pipeline_mode<synchronous>, transform_indices = @transform_1, window_bounds = array<i64: 4, 128>}, {transform_indices = @transform_2, window_bounds = array<i64: 64, 4>}]} {
    %0 = tpu.iota {dimensions = array<i32: 1>} : vector<64x4xi32>
    %c3_i32 = arith.constant 3 : i32
    %1 = vector.broadcast %c3_i32 : i32 to vector<64x4xi32>
    %2 = arith.cmpi eq, %0, %1 : vector<64x4xi32>
    %3 = tpu.iota {dimensions = array<i32: 0>} : vector<64x1xi32>
    %c64_i32 = arith.constant 64 : i32
    %4 = arith.muli %arg0, %c64_i32 : i32
    %5 = vector.broadcast %4 : i32 to vector<64x1xi32>
    %6 = arith.addi %5, %3 : vector<64x1xi32>
    %c77_i32 = arith.constant 77 : i32
    %7 = vector.broadcast %c77_i32 : i32 to vector<64x1xi32>
    %8 = arith.cmpi slt, %6, %7 : vector<64x1xi32>
    %9 = arith.extui %8 : vector<64x1xi1> to vector<64x1xi32>
    %10 = arith.sitofp %9 : vector<64x1xi32> to vector<64x1xf32>
    %c0 = arith.constant 0 : index
    %c0_0 = arith.constant 0 : index
    %11 = vector.load %arg1[%c0, %c0_0] : memref<64x4xf32, #tpu.memory_space<vmem>>, vector<64x4xf32>
    %cst = arith.constant 0.000000e+00 : f32
    %12 = vector.broadcast %cst : f32 to vector<64x1xf32>
    %c0_i32 = arith.constant 0 : i32
    %cst_1 = arith.constant 0x7F800000 : f32
    %13:4 = scf.while (%arg4 = %c0_i32, %arg5 = %11, %arg6 = %12, %arg7 = %cst_1) : (i32, vector<64x4xf32>, vector<64x1xf32>, f32) -> (i32, vector<64x4xf32>, vector<64x1xf32>, f32) {
      %c300_i32 = arith.constant 300 : i32
      %18 = arith.cmpi slt, %arg4, %c300_i32 : i32
      %cst_4 = arith.constant 2.250000e-06 : f32
      %19 = arith.cmpf ogt, %arg7, %cst_4 : f32
      %20 = arith.andi %18, %19 : i1
      scf.condition(%20) %arg4, %arg5, %arg6, %arg7 : i32, vector<64x4xf32>, vector<64x1xf32>, f32
    } do {
    ^bb0(%arg4: i32, %arg5: vector<64x4xf32>, %arg6: vector<64x1xf32>, %arg7: f32):
      %18 = vector.extract_strided_slice %arg5 {offsets = [0, 0], sizes = [64, 1], strides = [1, 1]} : vector<64x4xf32> to vector<64x1xf32>
      %19 = vector.extract_strided_slice %arg5 {offsets = [0, 1], sizes = [64, 1], strides = [1, 1]} : vector<64x4xf32> to vector<64x1xf32>
      %20 = vector.extract_strided_slice %arg5 {offsets = [0, 2], sizes = [64, 1], strides = [1, 1]} : vector<64x4xf32> to vector<64x1xf32>
      %cst_4 = arith.constant 0.000000e+00 : f32
      %21 = vector.broadcast %cst_4 : f32 to vector<64x4xf32>
      %c0_i32_5 = arith.constant 0 : i32
      %c128_i32 = arith.constant 128 : i32
      %22 = arith.muli %c0_i32_5, %c128_i32 : i32
      %23 = tpu.assume_multiple %22, 128 : i32
      %c0_6 = arith.constant 0 : index
      %24 = arith.index_cast %23 : i32 to index
      %25 = vector.load %arg2[%c0_6, %24] : memref<4x128xf32, #tpu.memory_space<vmem>>, vector<4x128xf32>
      %26 = vector.extract_strided_slice %25 {offsets = [0, 0], sizes = [1, 128], strides = [1, 1]} : vector<4x128xf32> to vector<1x128xf32>
      %27 = vector.broadcast %18 : vector<64x1xf32> to vector<64x128xf32>
      %28 = vector.broadcast %26 : vector<1x128xf32> to vector<64x128xf32>
      %29 = arith.subf %27, %28 : vector<64x128xf32>
      %30 = vector.extract_strided_slice %25 {offsets = [1, 0], sizes = [1, 128], strides = [1, 1]} : vector<4x128xf32> to vector<1x128xf32>
      %31 = vector.broadcast %19 : vector<64x1xf32> to vector<64x128xf32>
      %32 = vector.broadcast %30 : vector<1x128xf32> to vector<64x128xf32>
      %33 = arith.subf %31, %32 : vector<64x128xf32>
      %34 = vector.extract_strided_slice %25 {offsets = [2, 0], sizes = [1, 128], strides = [1, 1]} : vector<4x128xf32> to vector<1x128xf32>
      %35 = vector.broadcast %20 : vector<64x1xf32> to vector<64x128xf32>
      %36 = vector.broadcast %34 : vector<1x128xf32> to vector<64x128xf32>
      %37 = arith.subf %35, %36 : vector<64x128xf32>
      %38 = arith.mulf %29, %29 : vector<64x128xf32>
      %39 = arith.mulf %33, %33 : vector<64x128xf32>
      %40 = arith.addf %38, %39 : vector<64x128xf32>
      %41 = arith.mulf %37, %37 : vector<64x128xf32>
      %42 = arith.addf %40, %41 : vector<64x128xf32>
      %cst_7 = arith.constant 2.250000e+00 : f32
      %43 = vector.broadcast %cst_7 : f32 to vector<64x128xf32>
      %44 = arith.cmpf ole, %42, %43 : vector<64x128xf32>
      %45 = arith.extui %44 : vector<64x128xi1> to vector<64x128xi32>
      %46 = arith.sitofp %45 : vector<64x128xi32> to vector<64x128xf32>
      %cst_8 = arith.constant dense<0.000000e+00> : vector<64x4xf32>
      %47 = tpu.matmul %46, %25, %cst_8 {dimension_numbers = #tpu.dot_dimension_numbers<[1], [1], [0], [0], [0, 0, 1, 0], [], []>} : vector<64x128xf32>, vector<4x128xf32>, vector<64x4xf32> -> vector<64x4xf32>
      %48 = arith.addf %21, %47 : vector<64x4xf32>
      %c1_i32 = arith.constant 1 : i32
      %49 = vector.extract_strided_slice %48 {offsets = [0, 3], sizes = [64, 1], strides = [1, 1]} : vector<64x4xf32> to vector<64x1xf32>
      %cst_9 = arith.constant 0.000000e+00 : f32
      %50 = vector.broadcast %cst_9 : f32 to vector<64x1xf32>
      %51 = arith.cmpf ogt, %49, %50 : vector<64x1xf32>
      %cst_10 = arith.constant 1.000000e+00 : f32
      %52 = vector.broadcast %cst_10 : f32 to vector<64x1xf32>
      %53 = arith.maximumf %49, %52 : vector<64x1xf32>
      %54 = vector.broadcast %53 : vector<64x1xf32> to vector<64x4xf32>
      %55 = arith.divf %48, %54 : vector<64x4xf32>
      %56 = vector.shape_cast %51 : vector<64x1xi1> to vector<64x1xi1>
      %57 = vector.broadcast %56 : vector<64x1xi1> to vector<64x4xi1>
      %58 = arith.select %57, %55, %arg5 : vector<64x4xi1>, vector<64x4xf32>
      %59 = arith.subf %58, %arg5 : vector<64x4xf32>
      %cst_11 = arith.constant 0.000000e+00 : f32
      %60 = vector.broadcast %cst_11 : f32 to vector<64x4xf32>
      %61 = arith.select %2, %60, %59 : vector<64x4xi1>, vector<64x4xf32>
      %62 = vector.broadcast %10 : vector<64x1xf32> to vector<64x4xf32>
      %63 = arith.mulf %61, %62 : vector<64x4xf32>
      %64 = arith.mulf %63, %63 : vector<64x4xf32>
      %cst_12 = arith.constant dense<0.000000e+00> : vector<64xf32>
      %65 = vector.multi_reduction <add>, %64, %cst_12 [1] : vector<64x4xf32> to vector<64xf32>
      %66 = vector.shape_cast %65 : vector<64xf32> to vector<64x1xf32>
      %67 = vector.shape_cast %66 : vector<64x1xf32> to vector<1x64x1xf32>
      %cst_13 = arith.constant dense<0xFF800000> : vector<1xf32>
      %68 = vector.multi_reduction <maximumf>, %67, %cst_13 [1, 2] : vector<1x64x1xf32> to vector<1xf32>
      %69 = vector.shape_cast %68 : vector<1xf32> to vector<1x1x1xf32>
      %70 = vector.extract %69[0, 0, 0] : f32 from vector<1x1x1xf32>
      %c1_i32_14 = arith.constant 1 : i32
      %71 = arith.addi %arg4, %c1_i32_14 : i32
      scf.yield %71, %58, %49, %70 : i32, vector<64x4xf32>, vector<64x1xf32>, f32
    }
    %14 = vector.shape_cast %13#2 : vector<64x1xf32> to vector<64x1xf32>
    %15 = vector.broadcast %14 : vector<64x1xf32> to vector<64x4xf32>
    %16 = arith.select %2, %15, %13#1 : vector<64x4xi1>, vector<64x4xf32>
    %c0_2 = arith.constant 0 : index
    %c0_3 = arith.constant 0 : index
    %17 = vector.load %arg3[%c0_2, %c0_3] : memref<64x4xf32, #tpu.memory_space<vmem>>, vector<64x4xf32>
    tpu.vector_store %arg3[%c0_2, %c0_3], %16 {strides = array<i32>} : memref<64x4xf32, #tpu.memory_space<vmem>>, vector<64x4xf32>,
    return
  }
  func.func @transform_0(%arg0: i32) -> (i32, i32) {
    %c0_i32 = arith.constant 0 : i32
    %c0_i32_0 = arith.constant 0 : i32
    return %arg0, %c0_i32 : i32, i32
  }
  func.func @transform_1(%arg0: i32) -> (i32, i32) {
    %c0_i32 = arith.constant 0 : i32
    %c0_i32_0 = arith.constant 0 : i32
    %c0_i32_1 = arith.constant 0 : i32
    return %c0_i32, %c0_i32_0 : i32, i32
  }
  func.func @transform_2(%arg0: i32) -> (i32, i32) {
    %c0_i32 = arith.constant 0 : i32
    %c0_i32_0 = arith.constant 0 : i32
    return %arg0, %c0_i32 : i32, i32
  }
}

</mosaic_0001>

<llo_original>
// kernel: tpu_custom_call.1
$region0: #{tpu_custom_call.1}
  #allocation0 [shape = 'u32[]', space=smem, size = 0x4, offset = 0x4, fixed_abs, tag = 'smem constant byte address 0x4 - core index']
  #allocation1 [shape = 'u32[72,128]{1,0:T(1,128)}', space=vmem, size = 0x9000, scoped, tag = 'internal scratch']
  %s0 = inlined_call_operand.vmem [shape: f32[128,4], index: 0, kind: input, shape index: {}]
  %s1 = inlined_call_operand.vmem [shape: f32[4,128], index: 1, kind: input, shape index: {}]
  %s2 = inlined_call_operand.vmem [shape: f32[128,4], index: 2, kind: output, shape index: {}]
  %s3 = sld [smem:[#allocation0]]
  $region48: #{tpu_custom_call.1} parent=0
    _
  %s5 = ssub.s32 1, %s3
  %s6 = scalar_select 0, %s5, %s3
  loop: start=0, step=1, limit=4
  $region2: #{tpu_custom_call.1} parent=0 // loop_pre_header
    _
  $region3: #{tpu_custom_call.1} parent=0 // loop_header
    %s8 = sphi 0, %s12
    %p9 = scmp.ge.s32.totalorder %s8, 4
    %s18 = sphi 0, %s20
    %s21 = sphi 0, %s18
    %s22 = sphi 0, %s21
    %s38 = sphi 0, %s22
    %s42 = sphi 0, %s42
    %s44 = sphi 0, %s42
    %s45 = sphi 0, %s44
    %s59 = sphi 0, %s45
    %s65 = sphi 0, %s67
    %s68 = sphi 0, %s65
    %s69 = sphi 0, %s68
    %s85 = sphi 0, %s69
  $region4: #{tpu_custom_call.1} parent=0 // loop_header_branch
    %11 = sbr.rel (%p9) target = $region8
  $region5: #{tpu_custom_call.1} parent=0 // loop_body
    %s13 = ssub.s32 %s8, 1
    %s14 = ssub.s32 %s8, 2
    %s15 = sadd.s32 %s8, 1
    %s16 = ssub.s32 %s8, %s15
    %p17 = scmp.eq.s32.totalorder %s16, 0
    %s19 = sadd.s32 %s18, 1
    %s20 = scalar_select %p17, %s18, %s19
    %p23 = pneg %p17
    %p24 = scmp.eq.s32.totalorder %s8, 1
    %p25 = por %p23, %p24
    %p26 = scmp.ne.s32.totalorder %s18, %s21
    %p27 = scmp.eq.s32.totalorder %s8, 0
    %p28 = por %p26, %p27
    %p29 = scmp.ne.s32.totalorder %s18, %s21
    %p30 = scmp.eq.s32.totalorder %s13, 1
    %p31 = por %p29, %p30
    %p32 = scmp.ne.s32.totalorder %s21, %s22
    %p33 = scmp.eq.s32.totalorder %s13, 0
    %p34 = por %p32, %p33
    %p35 = scmp.ne.s32.totalorder %s21, %s22
    %p36 = scmp.eq.s32.totalorder %s14, 1
    %p37 = por %p35, %p36
    %p39 = scmp.ne.s32.totalorder %s22, %s38
    %p40 = scmp.eq.s32.totalorder %s14, 0
    %p41 = por %p39, %p40
    %s43 = sadd.s32 %s42, 1
    %p46 = scmp.eq.s32.totalorder %s8, 1
    %p47 = scmp.ne.s32.totalorder %s42, %s44
    %p48 = scmp.eq.s32.totalorder %s8, 0
    %p49 = por %p47, %p48
    %p50 = scmp.ne.s32.totalorder %s42, %s44
    %p51 = scmp.eq.s32.totalorder %s13, 1
    %p52 = por %p50, %p51
    %p53 = scmp.ne.s32.totalorder %s44, %s45
    %p54 = scmp.eq.s32.totalorder %s13, 0
    %p55 = por %p53, %p54
    %p56 = scmp.ne.s32.totalorder %s44, %s45
    %p57 = scmp.eq.s32.totalorder %s14, 1
    %p58 = por %p56, %p57
    %p60 = scmp.ne.s32.totalorder %s45, %s59
    %p61 = scmp.eq.s32.totalorder %s14, 0
    %p62 = por %p60, %p61
    %s63 = ssub.s32 %s8, %s15
    %p64 = scmp.eq.s32.totalorder %s63, 0
    %s66 = sadd.s32 %s65, 1
    %s67 = scalar_select %p64, %s65, %s66
    %p70 = pneg %p64
    %p71 = scmp.eq.s32.totalorder %s8, 1
    %p72 = por %p70, %p71
    %p73 = scmp.ne.s32.totalorder %s65, %s68
    %p74 = scmp.eq.s32.totalorder %s8, 0
    %p75 = por %p73, %p74
    %p76 = scmp.ne.s32.totalorder %s65, %s68
    %p77 = scmp.eq.s32.totalorder %s13, 1
    %p78 = por %p76, %p77
    %p79 = scmp.ne.s32.totalorder %s68, %s69
    %p80 = scmp.eq.s32.totalorder %s13, 0
    %p81 = por %p79, %p80
    %p82 = scmp.ne.s32.totalorder %s68, %s69
    %p83 = scmp.eq.s32.totalorder %s14, 1
    %p84 = por %p82, %p83
    %p86 = scmp.ne.s32.totalorder %s69, %s85
    %p87 = scmp.eq.s32.totalorder %s14, 0
    %p88 = por %p86, %p87
    %p89 = scmp.le.s32.totalorder 1, %s8
    %p90 = scmp.lt.s32.totalorder %s8, 3
    %p91 = pnand %p89, %p90
    %p92 = pneg %p91
    // Predicated region
    $region9: #{tpu_custom_call.1} parent=5 // pred_check
      _
    $region10: #{tpu_custom_call.1} parent=5 // pred_check_branch
      %94 = sbr.rel (%p91) target = $region12
    $region11: #{tpu_custom_call.1} parent=5 // pred_region
      %s95 = ssub.s32 %s8, 1
      // Predicated region
      $region13: #{tpu_custom_call.1} parent=11 // pred_check
        %p96 = pneg %p55
      $region14: #{tpu_custom_call.1} parent=11 // pred_check_branch
        %98 = sbr.rel (%p96) target = $region16
      $region15: #{tpu_custom_call.1} parent=11 // pred_region
        _
      $region16: #{tpu_custom_call.1} parent=11 // pred_fallthru
        _
    $region12: #{tpu_custom_call.1} parent=5 // pred_fallthru
      _
    %p99 = scmp.lt.s32.totalorder %s8, 2
    // Predicated region
    $region17: #{tpu_custom_call.1} parent=5 // pred_check
      %p100 = pneg %p99
    $region18: #{tpu_custom_call.1} parent=5 // pred_check_branch
      %102 = sbr.rel (%p100) target = $region20
    $region19: #{tpu_custom_call.1} parent=5 // pred_region
      // Predicated region
      $region21: #{tpu_custom_call.1} parent=19 // pred_check
        %p103 = pneg %p28
      $region22: #{tpu_custom_call.1} parent=19 // pred_check_branch
        %105 = sbr.rel (%p103) target = $region24
      $region23: #{tpu_custom_call.1} parent=19 // pred_region
        %s106 = smul.u32 8, %s8
        %p107 = scmp.lt.s32.totalorder %s106, 15
        %s108 = scalar_select %p107, %s106, 15
        %s109 = smul.addr %s108, 8
        %s110 = scalar_lea.vmem %s0, %s109
        %s111 = smul.u32 8, %s8
      $region24: #{tpu_custom_call.1} parent=19 // pred_fallthru
        _
    $region20: #{tpu_custom_call.1} parent=5 // pred_fallthru
      _
    %p112 = scmp.le.s32.totalorder 1, %s8
    %p113 = scmp.lt.s32.totalorder %s8, 3
    %p114 = pnand %p112, %p113
    %p115 = pneg %p114
    // Predicated region
    $region25: #{tpu_custom_call.1} parent=5 // pred_check
      _
    $region26: #{tpu_custom_call.1} parent=5 // pred_check_branch
      %117 = sbr.rel (%p114) target = $region28
    $region27: #{tpu_custom_call.1} parent=5 // pred_region
      %s118 = ssub.s32 %s8, 1
      %s119 = smul.u32 8, %s13
      %p120 = scmp.lt.s32.totalorder %s119, 15
      %s121 = scalar_select %p120, %s119, 15
      %s122 = smul.addr %s121, 8
      %s123 = scalar_lea.vmem %s0, %s122
      %p124 = pneg %p34
      %p125 = pneg %p31
      %p126 = pneg %p55
      %p127 = pneg %p52
      %p128 = pneg %p81
      %p129 = pneg %p78
      %s130 = smul.u32 8, %s13
      %p131 = scmp.lt.s32.totalorder %s130, 15
      %s132 = scalar_select %p131, %s130, 15
      %s133 = smul.addr %s132, 8
      %s134 = scalar_lea.vmem %s2, %s133
      %s135 = smul.u32 8, %s13
      %p136 = scmp.lt.s32.totalorder %s135, 15
      %s137 = scalar_select %p136, %s135, 15
      %s138 = smul.addr %s137, 8
      %s139 = scalar_lea.vmem %s0, %s138
      %s140 = smul.u32 8, %s13
      %s141 = smul.u32 8, %s13
      %p142 = scmp.lt.s32.totalorder %s141, 15
      %s143 = scalar_select %p142, %s141, 15
      %s144 = smul.addr %s143, 8
      %s145 = scalar_lea.vmem %s2, %s144
      %s146 = smul.u32 8, %s13
      %v147 = vlaneseq
      %v148 = vand.u32 %v147, 127
      %vm149 = vcmp.eq.s32.totalorder %v148, 3
      %v150 = vlaneseq
      %v151 = vshrl.u32 %v150, 7
      %v152 = vadd.s32 %v151, 8
      %v153 = vadd.s32 %v151, 16
      %v154 = vadd.s32 %v151, 24
      %v155 = vadd.s32 %v151, 32
      %v156 = vadd.s32 %v151, 40
      %v157 = vadd.s32 %v151, 48
      %v158 = vadd.s32 %v151, 56
      %s159 = smul.u32 %s13, 64
      %v160 = vstv %s159
      %v161 = vadd.s32 %v160, %v151
      %v162 = vadd.s32 %v160, %v152
      %v163 = vadd.s32 %v160, %v153
      %v164 = vadd.s32 %v160, %v154
      %v165 = vadd.s32 %v160, %v155
      %v166 = vadd.s32 %v160, %v156
      %v167 = vadd.s32 %v160, %v157
      %v168 = vadd.s32 %v160, %v158
      %vm169 = vcmp.lt.s32.totalorder %v161, 77
      %vm170 = vcmp.lt.s32.totalorder %v162, 77
      %vm171 = vcmp.lt.s32.totalorder %v163, 77
      %vm172 = vcmp.lt.s32.totalorder %v164, 77
      %vm173 = vcmp.lt.s32.totalorder %v165, 77
      %vm174 = vcmp.lt.s32.totalorder %v166, 77
      %vm175 = vcmp.lt.s32.totalorder %v167, 77
      %vm176 = vcmp.lt.s32.totalorder %v168, 77
      %v177 = vsel %vm169, 1, 0
      %v178 = vsel %vm170, 1, 0
      %v179 = vsel %vm171, 1, 0
      %v180 = vsel %vm172, 1, 0
      %v181 = vsel %vm173, 1, 0
      %v182 = vsel %vm174, 1, 0
      %v183 = vsel %vm175, 1, 0
      %v184 = vsel %vm176, 1, 0
      %v185 = vcvt.s32.f32 %v177
      %v186 = vcvt.s32.f32 %v178
      %v187 = vcvt.s32.f32 %v179
      %v188 = vcvt.s32.f32 %v180
      %v189 = vcvt.s32.f32 %v181
      %v190 = vcvt.s32.f32 %v182
      %v191 = vcvt.s32.f32 %v183
      %v192 = vcvt.s32.f32 %v184
      %v193 = vld [vmem:[%s139] sm:$0xff]
      %v194 = vld [vmem:[%s139 + $0x8] sm:$0xff]
      %v195 = vld [vmem:[%s139 + $0x10] sm:$0xff]
      %v196 = vld [vmem:[%s139 + $0x18] sm:$0xff]
      %v197 = vld [vmem:[%s139 + $0x20] sm:$0xff]
      %v198 = vld [vmem:[%s139 + $0x28] sm:$0xff]
      %v199 = vld [vmem:[%s139 + $0x30] sm:$0xff]
      %v200 = vld [vmem:[%s139 + $0x38] sm:$0xff]
      // While loop
      $region29: #{tpu_custom_call.1} parent=27 // loop_pre_header
        _
      $region30: #{tpu_custom_call.1} parent=27 // loop_header
        %s202 = sphi 0, %s758
        %v203 = vphi %v193, %v679
        %v204 = vphi %v194, %v680
        %v205 = vphi %v195, %v681
        %v206 = vphi %v196, %v682
        %v207 = vphi %v197, %v683
        %v208 = vphi %v198, %v684
        %v209 = vphi %v199, %v685
        %v210 = vphi %v200, %v686
        %v211 = vphi 0.0, %v440
        %v212 = vphi 0.0, %v443
        %v213 = vphi 0.0, %v446
        %v214 = vphi 0.0, %v449
        %v215 = vphi 0.0, %v452
        %v216 = vphi 0.0, %v455
        %v217 = vphi 0.0, %v458
        %v218 = vphi 0.0, %v461
        %s219 = sphi inf, %s757
        %p220 = scmp.lt.s32.totalorder %s202, 300
        %p221 = scmp.gt.f32.partialorder %s219, 2.25e-06
        %p222 = pnand %p220, %p221
        %p223 = pneg %p222
      $region31: #{tpu_custom_call.1} parent=27 // loop_header_branch
        %225 = sbr.rel (%p222) target = $region35
      $region32: #{tpu_custom_call.1} parent=27 // loop_body
        %v226 = vld [vmem:[%s1] sm:$0xf]
        %228 = vset.pattern.permute.xlu0 0
        %229 = vperm.xlu0 %228, %v203
        %v230 = vpop.permute.xlu0 %229
        %233 = vset.pattern.permute.xlu0 0
        %234 = vperm.xlu0 %233, %v204
        %v235 = vpop.permute.xlu0 %234
        %238 = vset.pattern.permute.xlu0 0
        %239 = vperm.xlu0 %238, %v205
        %v240 = vpop.permute.xlu0 %239
        %243 = vset.pattern.permute.xlu0 0
        %244 = vperm.xlu0 %243, %v206
        %v245 = vpop.permute.xlu0 %244
        %248 = vset.pattern.permute.xlu0 0
        %249 = vperm.xlu0 %248, %v207
        %v250 = vpop.permute.xlu0 %249
        %253 = vset.pattern.permute.xlu0 0
        %254 = vperm.xlu0 %253, %v208
        %v255 = vpop.permute.xlu0 %254
        %258 = vset.pattern.permute.xlu0 0
        %259 = vperm.xlu0 %258, %v209
        %v260 = vpop.permute.xlu0 %259
        %263 = vset.pattern.permute.xlu0 0
        %264 = vperm.xlu0 %263, %v210
        %v265 = vpop.permute.xlu0 %264
        %v267 = vperm.slane %v226, 0
        %v268 = vsub.f32 %v230, %v267
        %v269 = vsub.f32 %v235, %v267
        %v270 = vsub.f32 %v240, %v267
        %v271 = vsub.f32 %v245, %v267
        %v272 = vsub.f32 %v250, %v267
        %v273 = vsub.f32 %v255, %v267
        %v274 = vsub.f32 %v260, %v267
        %v275 = vsub.f32 %v265, %v267
        %276 = vset.pattern.permute.xlu0 1
        %277 = vperm.xlu0 %276, %v203
        %v278 = vpop.permute.xlu0 %277
        %280 = vset.pattern.permute.xlu0 1
        %281 = vperm.xlu0 %280, %v204
        %v282 = vpop.permute.xlu0 %281
        %284 = vset.pattern.permute.xlu0 1
        %285 = vperm.xlu0 %284, %v205
        %v286 = vpop.permute.xlu0 %285
        %288 = vset.pattern.permute.xlu0 1
        %289 = vperm.xlu0 %288, %v206
        %v290 = vpop.permute.xlu0 %289
        %292 = vset.pattern.permute.xlu0 1
        %293 = vperm.xlu0 %292, %v207
        %v294 = vpop.permute.xlu0 %293
        %296 = vset.pattern.permute.xlu0 1
        %297 = vperm.xlu0 %296, %v208
        %v298 = vpop.permute.xlu0 %297
        %300 = vset.pattern.permute.xlu0 1
        %301 = vperm.xlu0 %300, %v209
        %v302 = vpop.permute.xlu0 %301
        %304 = vset.pattern.permute.xlu0 1
        %305 = vperm.xlu0 %304, %v210
        %v306 = vpop.permute.xlu0 %305
        %v308 = vperm.slane %v226, 1
        %v309 = vsub.f32 %v278, %v308
        %v310 = vsub.f32 %v282, %v308
        %v311 = vsub.f32 %v286, %v308
        %v312 = vsub.f32 %v290, %v308
        %v313 = vsub.f32 %v294, %v308
        %v314 = vsub.f32 %v298, %v308
        %v315 = vsub.f32 %v302, %v308
        %v316 = vsub.f32 %v306, %v308
        %317 = vset.pattern.permute.xlu0 2
        %318 = vperm.xlu0 %317, %v203
        %v319 = vpop.permute.xlu0 %318
        %321 = vset.pattern.permute.xlu0 2
        %322 = vperm.xlu0 %321, %v204
        %v323 = vpop.permute.xlu0 %322
        %325 = vset.pattern.permute.xlu0 2
        %326 = vperm.xlu0 %325, %v205
        %v327 = vpop.permute.xlu0 %326
        %329 = vset.pattern.permute.xlu0 2
        %330 = vperm.xlu0 %329, %v206
        %v331 = vpop.permute.xlu0 %330
        %333 = vset.pattern.permute.xlu0 2
        %334 = vperm.xlu0 %333, %v207
        %v335 = vpop.permute.xlu0 %334
        %337 = vset.pattern.permute.xlu0 2
        %338 = vperm.xlu0 %337, %v208
        %v339 = vpop.permute.xlu0 %338
        %341 = vset.pattern.permute.xlu0 2
        %342 = vperm.xlu0 %341, %v209
        %v343 = vpop.permute.xlu0 %342
        %345 = vset.pattern.permute.xlu0 2
        %346 = vperm.xlu0 %345, %v210
        %v347 = vpop.permute.xlu0 %346
        %v349 = vperm.slane %v226, 2
        %v350 = vsub.f32 %v319, %v349
        %v351 = vsub.f32 %v323, %v349
        %v352 = vsub.f32 %v327, %v349
        %v353 = vsub.f32 %v331, %v349
        %v354 = vsub.f32 %v335, %v349
        %v355 = vsub.f32 %v339, %v349
        %v356 = vsub.f32 %v343, %v349
        %v357 = vsub.f32 %v347, %v349
        %v358 = vmul.f32 %v268, %v268
        %v359 = vmul.f32 %v269, %v269
        %v360 = vmul.f32 %v270, %v270
        %v361 = vmul.f32 %v271, %v271
        %v362 = vmul.f32 %v272, %v272
        %v363 = vmul.f32 %v273, %v273
        %v364 = vmul.f32 %v274, %v274
        %v365 = vmul.f32 %v275, %v275
        %v366 = vmul.f32 %v309, %v309
        %v367 = vmul.f32 %v310, %v310
        %v368 = vmul.f32 %v311, %v311
        %v369 = vmul.f32 %v312, %v312
        %v370 = vmul.f32 %v313, %v313
        %v371 = vmul.f32 %v314, %v314
        %v372 = vmul.f32 %v315, %v315
        %v373 = vmul.f32 %v316, %v316
        %v374 = vadd.f32 %v358, %v366
        %v375 = vadd.f32 %v359, %v367
        %v376 = vadd.f32 %v360, %v368
        %v377 = vadd.f32 %v361, %v369
        %v378 = vadd.f32 %v362, %v370
        %v379 = vadd.f32 %v363, %v371
        %v380 = vadd.f32 %v364, %v372
        %v381 = vadd.f32 %v365, %v373
        %v382 = vmul.f32 %v350, %v350
        %v383 = vmul.f32 %v351, %v351
        %v384 = vmul.f32 %v352, %v352
        %v385 = vmul.f32 %v353, %v353
        %v386 = vmul.f32 %v354, %v354
        %v387 = vmul.f32 %v355, %v355
        %v388 = vmul.f32 %v356, %v356
        %v389 = vmul.f32 %v357, %v357
        %v390 = vadd.f32 %v374, %v382
        %v391 = vadd.f32 %v375, %v383
        %v392 = vadd.f32 %v376, %v384
        %v393 = vadd.f32 %v377, %v385
        %v394 = vadd.f32 %v378, %v386
        %v395 = vadd.f32 %v379, %v387
        %v396 = vadd.f32 %v380, %v388
        %v397 = vadd.f32 %v381, %v389
        %vm398 = vcmp.le.f32.partialorder %v390, 2.25
        %vm399 = vcmp.le.f32.partialorder %v391, 2.25
        %vm400 = vcmp.le.f32.partialorder %v392, 2.25
        %vm401 = vcmp.le.f32.partialorder %v393, 2.25
        %vm402 = vcmp.le.f32.partialorder %v394, 2.25
        %vm403 = vcmp.le.f32.partialorder %v395, 2.25
        %vm404 = vcmp.le.f32.partialorder %v396, 2.25
        %vm405 = vcmp.le.f32.partialorder %v397, 2.25
        %v406 = vsel %vm398, 1, 0
        %v407 = vsel %vm399, 1, 0
        %v408 = vsel %vm400, 1, 0
        %v409 = vsel %vm401, 1, 0
        %v410 = vsel %vm402, 1, 0
        %v411 = vsel %vm403, 1, 0
        %v412 = vsel %vm404, 1, 0
        %v413 = vsel %vm405, 1, 0
        %v414 = vcvt.s32.f32 %v406
        %v415 = vcvt.s32.f32 %v407
        %v416 = vcvt.s32.f32 %v408
        %v417 = vcvt.s32.f32 %v409
        %v418 = vcvt.s32.f32 %v410
        %v419 = vcvt.s32.f32 %v411
        %v420 = vcvt.s32.f32 %v412
        %v421 = vcvt.s32.f32 %v413
        %422 = vmatpush.xpose.msra.mxu0 0.0
        %423 = vmatpush.xpose.msra.mxu0 0.0
        %424 = vmatpush.xpose.msra.mxu0 0.0
        %425 = vmatpush.xpose.msra.mxu0 0.0
        %426 = vmatpush.xpose.msra.mxu0 0.0
        %427 = vmatpush.xpose.msra.mxu0 0.0
        %428 = vmatpush.xpose.msra.mxu0 0.0
        %429 = vmatpush.xpose.msra.mxu0 0.0
        %430 = vmatpush.xpose.msra.mxu0 0.0
        %431 = vmatpush.xpose.msra.mxu0 0.0
        %432 = vmatpush.xpose.msra.mxu0 0.0
        %433 = vmatpush.xpose.msra.mxu0 0.0
        %434 = vmatpush.xpose.msra.mxu0 0.0
        %435 = vmatpush.xpose.msra.mxu0 0.0
        %436 = vmatpush.xpose.msra.mxu0 0.0
        %437 = vmatpush.xpose.msra.mxu0 %v226
        %438 = vmatmul.f32.gmra.mxu0 %v414
        %v439 = vpop.f32.mrf.mxu0
        %v440 = vadd.f32 0.0, %v439
        %441 = vmatmul.f32.gmra.mxu0 %v415
        %v442 = vpop.f32.mrf.mxu0
        %v443 = vadd.f32 0.0, %v442
        %444 = vmatmul.f32.gmra.mxu0 %v416
        %v445 = vpop.f32.mrf.mxu0
        %v446 = vadd.f32 0.0, %v445
        %447 = vmatmul.f32.gmra.mxu0 %v417
        %v448 = vpop.f32.mrf.mxu0
        %v449 = vadd.f32 0.0, %v448
        %450 = vmatmul.f32.gmra.mxu0 %v418
        %v451 = vpop.f32.mrf.mxu0
        %v452 = vadd.f32 0.0, %v451
        %453 = vmatmul.f32.gmra.mxu0 %v419
        %v454 = vpop.f32.mrf.mxu0
        %v455 = vadd.f32 0.0, %v454
        %456 = vmatmul.f32.gmra.mxu0 %v420
        %v457 = vpop.f32.mrf.mxu0
        %v458 = vadd.f32 0.0, %v457
        %459 = vmatmul.f32.gmra.mxu0 %v421
        %v460 = vpop.f32.mrf.mxu0
        %v461 = vadd.f32 0.0, %v460
        %462 = vdwg.mxu0
        %vm463 = vcmp.gt.f32.partialorder %v440, 0.0
        %vm464 = vcmp.gt.f32.partialorder %v443, 0.0
        %vm465 = vcmp.gt.f32.partialorder %v446, 0.0
        %vm466 = vcmp.gt.f32.partialorder %v449, 0.0
        %vm467 = vcmp.gt.f32.partialorder %v452, 0.0
        %vm468 = vcmp.gt.f32.partialorder %v455, 0.0
        %vm469 = vcmp.gt.f32.partialorder %v458, 0.0
        %vm470 = vcmp.gt.f32.partialorder %v461, 0.0
        %v471 = vmax.f32 %v440, 1.0
        %v472 = vmax.f32 %v443, 1.0
        %v473 = vmax.f32 %v446, 1.0
        %v474 = vmax.f32 %v449, 1.0
        %v475 = vmax.f32 %v452, 1.0
        %v476 = vmax.f32 %v455, 1.0
        %v477 = vmax.f32 %v458, 1.0
        %v478 = vmax.f32 %v461, 1.0
        %480 = vset.pattern.permute.xlu0 3
        %481 = vperm.xlu0 %480, %v471
        %v482 = vpop.permute.xlu0 %481
        %485 = vset.pattern.permute.xlu0 3
        %486 = vperm.xlu0 %485, %v472
        %v487 = vpop.permute.xlu0 %486
        %490 = vset.pattern.permute.xlu0 3
        %491 = vperm.xlu0 %490, %v473
        %v492 = vpop.permute.xlu0 %491
        %495 = vset.pattern.permute.xlu0 3
        %496 = vperm.xlu0 %495, %v474
        %v497 = vpop.permute.xlu0 %496
        %500 = vset.pattern.permute.xlu0 3
        %501 = vperm.xlu0 %500, %v475
        %v502 = vpop.permute.xlu0 %501
        %505 = vset.pattern.permute.xlu0 3
        %506 = vperm.xlu0 %505, %v476
        %v507 = vpop.permute.xlu0 %506
        %510 = vset.pattern.permute.xlu0 3
        %511 = vperm.xlu0 %510, %v477
        %v512 = vpop.permute.xlu0 %511
        %515 = vset.pattern.permute.xlu0 3
        %516 = vperm.xlu0 %515, %v478
        %v517 = vpop.permute.xlu0 %516
        %v519 = vrcp.pop %v482
        %v520 = vmul.f32 %v482, %v519
        %v521 = vsub.f32 1.0, %v520
        %v522 = vmul.f32 %v519, %v521
        %v523 = vadd.f32 %v519, %v522
        %vm524 = vweird.f32 %v482
        %vm525 = vweird.f32 %v519
        %vm526 = vmor %vm524, %vm525
        %v527 = vsel %vm526, %v519, %v523
        %v528 = vand.u32 2147483647, %v482
        %vm529 = vcmp.eq.f32.partialorder %v528, 8.507059e+37
        %v530 = vand.u32 %v482, 2147483648
        %v531 = vor.u32 1.1754944e-38, %v530
        %v532 = vsel %vm529, %v531, %v527
        %v533 = vmul.f32 %v440, %v532
        %v534 = vrcp.pop %v487
        %v535 = vmul.f32 %v487, %v534
        %v536 = vsub.f32 1.0, %v535
        %v537 = vmul.f32 %v534, %v536
        %v538 = vadd.f32 %v534, %v537
        %vm539 = vweird.f32 %v487
        %vm540 = vweird.f32 %v534
        %vm541 = vmor %vm539, %vm540
        %v542 = vsel %vm541, %v534, %v538
        %v543 = vand.u32 2147483647, %v487
        %vm544 = vcmp.eq.f32.partialorder %v543, 8.507059e+37
        %v545 = vand.u32 %v487, 2147483648
        %v546 = vor.u32 1.1754944e-38, %v545
        %v547 = vsel %vm544, %v546, %v542
        %v548 = vmul.f32 %v443, %v547
        %v549 = vrcp.pop %v492
        %v550 = vmul.f32 %v492, %v549
        %v551 = vsub.f32 1.0, %v550
        %v552 = vmul.f32 %v549, %v551
        %v553 = vadd.f32 %v549, %v552
        %vm554 = vweird.f32 %v492
        %vm555 = vweird.f32 %v549
        %vm556 = vmor %vm554, %vm555
        %v557 = vsel %vm556, %v549, %v553
        %v558 = vand.u32 2147483647, %v492
        %vm559 = vcmp.eq.f32.partialorder %v558, 8.507059e+37
        %v560 = vand.u32 %v492, 2147483648
        %v561 = vor.u32 1.1754944e-38, %v560
        %v562 = vsel %vm559, %v561, %v557
        %v563 = vmul.f32 %v446, %v562
        %v564 = vrcp.pop %v497
        %v565 = vmul.f32 %v497, %v564
        %v566 = vsub.f32 1.0, %v565
        %v567 = vmul.f32 %v564, %v566
        %v568 = vadd.f32 %v564, %v567
        %vm569 = vweird.f32 %v497
        %vm570 = vweird.f32 %v564
        %vm571 = vmor %vm569, %vm570
        %v572 = vsel %vm571, %v564, %v568
        %v573 = vand.u32 2147483647, %v497
        %vm574 = vcmp.eq.f32.partialorder %v573, 8.507059e+37
        %v575 = vand.u32 %v497, 2147483648
        %v576 = vor.u32 1.1754944e-38, %v575
        %v577 = vsel %vm574, %v576, %v572
        %v578 = vmul.f32 %v449, %v577
        %v579 = vrcp.pop %v502
        %v580 = vmul.f32 %v502, %v579
        %v581 = vsub.f32 1.0, %v580
        %v582 = vmul.f32 %v579, %v581
        %v583 = vadd.f32 %v579, %v582
        %vm584 = vweird.f32 %v502
        %vm585 = vweird.f32 %v579
        %vm586 = vmor %vm584, %vm585
        %v587 = vsel %vm586, %v579, %v583
        %v588 = vand.u32 2147483647, %v502
        %vm589 = vcmp.eq.f32.partialorder %v588, 8.507059e+37
        %v590 = vand.u32 %v502, 2147483648
        %v591 = vor.u32 1.1754944e-38, %v590
        %v592 = vsel %vm589, %v591, %v587
        %v593 = vmul.f32 %v452, %v592
        %v594 = vrcp.pop %v507
        %v595 = vmul.f32 %v507, %v594
        %v596 = vsub.f32 1.0, %v595
        %v597 = vmul.f32 %v594, %v596
        %v598 = vadd.f32 %v594, %v597
        %vm599 = vweird.f32 %v507
        %vm600 = vweird.f32 %v594
        %vm601 = vmor %vm599, %vm600
        %v602 = vsel %vm601, %v594, %v598
        %v603 = vand.u32 2147483647, %v507
        %vm604 = vcmp.eq.f32.partialorder %v603, 8.507059e+37
        %v605 = vand.u32 %v507, 2147483648
        %v606 = vor.u32 1.1754944e-38, %v605
        %v607 = vsel %vm604, %v606, %v602
        %v608 = vmul.f32 %v455, %v607
        %v609 = vrcp.pop %v512
        %v610 = vmul.f32 %v512, %v609
        %v611 = vsub.f32 1.0, %v610
        %v612 = vmul.f32 %v609, %v611
        %v613 = vadd.f32 %v609, %v612
        %vm614 = vweird.f32 %v512
        %vm615 = vweird.f32 %v609
        %vm616 = vmor %vm614, %vm615
        %v617 = vsel %vm616, %v609, %v613
        %v618 = vand.u32 2147483647, %v512
        %vm619 = vcmp.eq.f32.partialorder %v618, 8.507059e+37
        %v620 = vand.u32 %v512, 2147483648
        %v621 = vor.u32 1.1754944e-38, %v620
        %v622 = vsel %vm619, %v621, %v617
        %v623 = vmul.f32 %v458, %v622
        %v624 = vrcp.pop %v517
        %v625 = vmul.f32 %v517, %v624
        %v626 = vsub.f32 1.0, %v625
        %v627 = vmul.f32 %v624, %v626
        %v628 = vadd.f32 %v624, %v627
        %vm629 = vweird.f32 %v517
        %vm630 = vweird.f32 %v624
        %vm631 = vmor %vm629, %vm630
        %v632 = vsel %vm631, %v624, %v628
        %v633 = vand.u32 2147483647, %v517
        %vm634 = vcmp.eq.f32.partialorder %v633, 8.507059e+37
        %v635 = vand.u32 %v517, 2147483648
        %v636 = vor.u32 1.1754944e-38, %v635
        %v637 = vsel %vm634, %v636, %v632
        %v638 = vmul.f32 %v461, %v637
        %v639 = vsel %vm463, 1, 0
        %v640 = vsel %vm464, 1, 0
        %v641 = vsel %vm465, 1, 0
        %v642 = vsel %vm466, 1, 0
        %v643 = vsel %vm467, 1, 0
        %v644 = vsel %vm468, 1, 0
        %v645 = vsel %vm469, 1, 0
        %v646 = vsel %vm470, 1, 0
        %647 = vset.pattern.permute.xlu0 3
        %648 = vperm.xlu0 %647, %v639
        %v649 = vpop.permute.xlu0 %648
        %650 = vset.pattern.permute.xlu0 3
        %651 = vperm.xlu0 %650, %v640
        %v652 = vpop.permute.xlu0 %651
        %653 = vset.pattern.permute.xlu0 3
        %654 = vperm.xlu0 %653, %v641
        %v655 = vpop.permute.xlu0 %654
        %656 = vset.pattern.permute.xlu0 3
        %657 = vperm.xlu0 %656, %v642
        %v658 = vpop.permute.xlu0 %657
        %659 = vset.pattern.permute.xlu0 3
        %660 = vperm.xlu0 %659, %v643
        %v661 = vpop.permute.xlu0 %660
        %662 = vset.pattern.permute.xlu0 3
        %663 = vperm.xlu0 %662, %v644
        %v664 = vpop.permute.xlu0 %663
        %665 = vset.pattern.permute.xlu0 3
        %666 = vperm.xlu0 %665, %v645
        %v667 = vpop.permute.xlu0 %666
        %668 = vset.pattern.permute.xlu0 3
        %669 = vperm.xlu0 %668, %v646
        %v670 = vpop.permute.xlu0 %669
        %vm671 = vcmp.eq.s32.totalorder %v649, 1
        %vm672 = vcmp.eq.s32.totalorder %v652, 1
        %vm673 = vcmp.eq.s32.totalorder %v655, 1
        %vm674 = vcmp.eq.s32.totalorder %v658, 1
        %vm675 = vcmp.eq.s32.totalorder %v661, 1
        %vm676 = vcmp.eq.s32.totalorder %v664, 1
        %vm677 = vcmp.eq.s32.totalorder %v667, 1
        %vm678 = vcmp.eq.s32.totalorder %v670, 1
        %v679 = vsel %vm671, %v533, %v203
        %v680 = vsel %vm672, %v548, %v204
        %v681 = vsel %vm673, %v563, %v205
        %v682 = vsel %vm674, %v578, %v206
        %v683 = vsel %vm675, %v593, %v207
        %v684 = vsel %vm676, %v608, %v208
        %v685 = vsel %vm677, %v623, %v209
        %v686 = vsel %vm678, %v638, %v210
        %v687 = vsub.f32 %v679, %v203
        %v688 = vsub.f32 %v680, %v204
        %v689 = vsub.f32 %v681, %v205
        %v690 = vsub.f32 %v682, %v206
        %v691 = vsub.f32 %v683, %v207
        %v692 = vsub.f32 %v684, %v208
        %v693 = vsub.f32 %v685, %v209
        %v694 = vsub.f32 %v686, %v210
        %v695 = vsel %vm149, 0.0, %v687
        %v696 = vsel %vm149, 0.0, %v688
        %v697 = vsel %vm149, 0.0, %v689
        %v698 = vsel %vm149, 0.0, %v690
        %v699 = vsel %vm149, 0.0, %v691
        %v700 = vsel %vm149, 0.0, %v692
        %v701 = vsel %vm149, 0.0, %v693
        %v702 = vsel %vm149, 0.0, %v694
        %v703 = vmul.f32 %v695, %v185
        %v704 = vmul.f32 %v696, %v186
        %v705 = vmul.f32 %v697, %v187
        %v706 = vmul.f32 %v698, %v188
        %v707 = vmul.f32 %v699, %v189
        %v708 = vmul.f32 %v700, %v190
        %v709 = vmul.f32 %v701, %v191
        %v710 = vmul.f32 %v702, %v192
        %v711 = vmul.f32 %v703, %v703
        %v712 = vmul.f32 %v704, %v704
        %v713 = vmul.f32 %v705, %v705
        %v714 = vmul.f32 %v706, %v706
        %v715 = vmul.f32 %v707, %v707
        %v716 = vmul.f32 %v708, %v708
        %v717 = vmul.f32 %v709, %v709
        %v718 = vmul.f32 %v710, %v710
        %vm719 = vcmask 31744
        %v720 = vsel %vm719, %v711, 0.0
        %721 = vadd.xlane.f32.xlu0 %v720
        %v722 = vpop.xlane.xlu0 %721
        %v723 = vsel %vm719, %v712, 0.0
        %724 = vadd.xlane.f32.xlu0 %v723
        %v725 = vpop.xlane.xlu0 %724
        %v726 = vsel %vm719, %v713, 0.0
        %727 = vadd.xlane.f32.xlu0 %v726
        %v728 = vpop.xlane.xlu0 %727
        %v729 = vsel %vm719, %v714, 0.0
        %730 = vadd.xlane.f32.xlu0 %v729
        %v731 = vpop.xlane.xlu0 %730
        %v732 = vsel %vm719, %v715, 0.0
        %733 = vadd.xlane.f32.xlu0 %v732
        %v734 = vpop.xlane.xlu0 %733
        %v735 = vsel %vm719, %v716, 0.0
        %736 = vadd.xlane.f32.xlu0 %v735
        %v737 = vpop.xlane.xlu0 %736
        %v738 = vsel %vm719, %v717, 0.0
        %739 = vadd.xlane.f32.xlu0 %v738
        %v740 = vpop.xlane.xlu0 %739
        %v741 = vsel %vm719, %v718, 0.0
        %742 = vadd.xlane.f32.xlu0 %v741
        %v743 = vpop.xlane.xlu0 %742
        %v744 = vmax.f32 %v722, %v734
        %v745 = vmax.f32 %v725, %v737
        %v746 = vmax.f32 %v728, %v740
        %v747 = vmax.f32 %v731, %v743
        %v748 = vmax.f32 %v744, %v745
        %v749 = vmax.f32 %v746, %v747
        %v750 = vmax.f32 %v748, %v749
        %v751 = vrot.slane %v750, 4
        %v752 = vmax.f32 %v750, %v751
        %v753 = vrot.slane %v752, 2
        %v754 = vmax.f32 %v752, %v753
        %v755 = vrot.slane %v754, 1
        %v756 = vmax.f32 %v754, %v755
        %s757 = vtos %v756
        %s758 = sadd.s32 %s202, 1
      $region33: #{tpu_custom_call.1} parent=27 // loop_footer
        _
      $region34: #{tpu_custom_call.1} parent=27 // loop_footer_branch
        %201 = sbr.rel target = $region30
      $region35: #{tpu_custom_call.1} parent=27 // loop_exit
        _
      %760 = vset.pattern.permute.xlu0 3
      %761 = vperm.xlu0 %760, %v211
      %v762 = vpop.permute.xlu0 %761
      %765 = vset.pattern.permute.xlu0 3
      %766 = vperm.xlu0 %765, %v212
      %v767 = vpop.permute.xlu0 %766
      %770 = vset.pattern.permute.xlu0 3
      %771 = vperm.xlu0 %770, %v213
      %v772 = vpop.permute.xlu0 %771
      %775 = vset.pattern.permute.xlu0 3
      %776 = vperm.xlu0 %775, %v214
      %v777 = vpop.permute.xlu0 %776
      %780 = vset.pattern.permute.xlu0 3
      %781 = vperm.xlu0 %780, %v215
      %v782 = vpop.permute.xlu0 %781
      %785 = vset.pattern.permute.xlu0 3
      %786 = vperm.xlu0 %785, %v216
      %v787 = vpop.permute.xlu0 %786
      %790 = vset.pattern.permute.xlu0 3
      %791 = vperm.xlu0 %790, %v217
      %v792 = vpop.permute.xlu0 %791
      %795 = vset.pattern.permute.xlu0 3
      %796 = vperm.xlu0 %795, %v218
      %v797 = vpop.permute.xlu0 %796
      %v799 = vsel %vm149, %v762, %v203
      %v800 = vsel %vm149, %v767, %v204
      %v801 = vsel %vm149, %v772, %v205
      %v802 = vsel %vm149, %v777, %v206
      %v803 = vsel %vm149, %v782, %v207
      %v804 = vsel %vm149, %v787, %v208
      %v805 = vsel %vm149, %v792, %v209
      %v806 = vsel %vm149, %v797, %v210
      %vm807 = vcmask 31744
      %808 = vst.msk [vmem:[%s145] sm:$0xff] %vm807, %v799
      %809 = vst.msk [vmem:[%s145 + $0x8] sm:$0xff] %vm807, %v800
      %810 = vst.msk [vmem:[%s145 + $0x10] sm:$0xff] %vm807, %v801
      %811 = vst.msk [vmem:[%s145 + $0x18] sm:$0xff] %vm807, %v802
      %812 = vst.msk [vmem:[%s145 + $0x20] sm:$0xff] %vm807, %v803
      %813 = vst.msk [vmem:[%s145 + $0x28] sm:$0xff] %vm807, %v804
      %814 = vst.msk [vmem:[%s145 + $0x30] sm:$0xff] %vm807, %v805
      %815 = vst.msk [vmem:[%s145 + $0x38] sm:$0xff] %vm807, %v806
      %s816 = smul.u32 8, %s13
      %p817 = scmp.lt.s32.totalorder %s816, 15
      %s818 = scalar_select %p817, %s816, 15
      %s819 = smul.addr %s818, 8
      %s820 = scalar_lea.vmem %s2, %s819
      // Predicated region
      $region36: #{tpu_custom_call.1} parent=27 // pred_check
        %p821 = pneg %p78
      $region37: #{tpu_custom_call.1} parent=27 // pred_check_branch
        %823 = sbr.rel (%p821) target = $region39
      $region38: #{tpu_custom_call.1} parent=27 // pred_region
        %s824 = smul.u32 8, %s13
      $region39: #{tpu_custom_call.1} parent=27 // pred_fallthru
        _
    $region28: #{tpu_custom_call.1} parent=5 // pred_fallthru
      _
    %p825 = scmp.le.s32.totalorder 2, %s8
    // Predicated region
    $region40: #{tpu_custom_call.1} parent=5 // pred_check
      %p826 = pneg %p825
    $region41: #{tpu_custom_call.1} parent=5 // pred_check_branch
      %828 = sbr.rel (%p826) target = $region43
    $region42: #{tpu_custom_call.1} parent=5 // pred_region
      %s829 = ssub.s32 %s8, 2
      // Predicated region
      $region44: #{tpu_custom_call.1} parent=42 // pred_check
        %p830 = pneg %p84
      $region45: #{tpu_custom_call.1} parent=42 // pred_check_branch
        %832 = sbr.rel (%p830) target = $region47
      $region46: #{tpu_custom_call.1} parent=42 // pred_region
        %s833 = smul.u32 8, %s14
        %p834 = scmp.lt.s32.totalorder %s833, 15
        %s835 = scalar_select %p834, %s833, 15
        %s836 = smul.addr %s835, 8
        %s837 = scalar_lea.vmem %s2, %s836
      $region47: #{tpu_custom_call.1} parent=42 // pred_fallthru
        _
    $region43: #{tpu_custom_call.1} parent=5 // pred_fallthru
      _
  $region6: #{tpu_custom_call.1} parent=0 // loop_footer
    %s12 = sadd.s32 1, %s8
  $region7: #{tpu_custom_call.1} parent=0 // loop_footer_branch
    %7 = sbr.rel target = $region3
  $region8: #{tpu_custom_call.1} parent=0 // loop_exit
    _

</llo_original>
